<compile_context>
chip_gen: v7x
topology: tpu7x:2x2x1
jax: 0.10.0
libtpu: 0.0.40
codegen_flags: <defaults>
</compile_context>

<pallas_src>
import jax
import jax.numpy as jnp
from jax.experimental import pallas as pl
from jax.experimental.pallas import tpu as pltpu

# Fixed (non-trainable) 3x3 conv kernels from the module's __init__ (used only by the
# pure-JAX reference; the Pallas kernel exploits that the only nonzero taps are +/-1
# and computes shifted differences directly).
KERNEL_V = jnp.array([[0., -1., 0.],
                      [0.,  0., 0.],
                      [0.,  1., 0.]], dtype=jnp.float32)
KERNEL_H = jnp.array([[0.,  0., 0.],
                      [-1., 0., 1.],
                      [0.,  0., 0.]], dtype=jnp.float32)


def _horizontal_diff(x, h, w):
    """x[:, j+1] - x[:, j-1] with zero padding at the left/right image edges."""
    lt = pltpu.roll(x, shift=1, axis=1)          # lt[:, j] = x[:, j-1] (col 0 wraps)
    rt = pltpu.roll(x, shift=w - 1, axis=1)      # rt[:, j] = x[:, j+1] (last col wraps)
    col = jax.lax.broadcasted_iota(jnp.int32, (h, w), 1)
    lt = jnp.where(col == 0, 0.0, lt)
    rt = jnp.where(col == w - 1, 0.0, rt)
    return rt - lt


def _make_full_kernel(h, w):
    """Kernel for the whole (H, W) channel-0 plane of one batch element."""

    def kernel(x_ref, o_ref):
        x = x_ref[...].astype(jnp.float32)       # (H, W)

        # vertical difference x[i+1,j] - x[i-1,j], zero padding top/bottom
        up = pltpu.roll(x, shift=1, axis=0)      # up[i] = x[i-1]
        dn = pltpu.roll(x, shift=h - 1, axis=0)  # dn[i] = x[i+1]
        row = jax.lax.broadcasted_iota(jnp.int32, (h, w), 0)
        up = jnp.where(row == 0, 0.0, up)
        dn = jnp.where(row == h - 1, 0.0, dn)
        g_v = dn - up

        g_h = _horizontal_diff(x, h, w)

        o_ref[...] = jnp.sqrt(g_v * g_v + g_h * g_h + 1e-6)

    return kernel


def _make_strip_kernel(th, w, hb):
    """Kernel for one (TH, W) row strip, with 8-row halo blocks above/below.

    Refs:
      x_ref   : (TH, W)  strip rows [h*TH, (h+1)*TH)
      top_ref : (HB, W)  8-row block whose last row is the row just ABOVE the strip
      bot_ref : (HB, W)  8-row block whose first row is the row just BELOW the strip
      o_ref   : (TH, W)  gradient magnitude output strip
    """

    def kernel(x_ref, top_ref, bot_ref, o_ref):
        h = pl.program_id(1)
        nh = pl.num_programs(1)

        x = x_ref[...].astype(jnp.float32)                   # (TH, W)

        # vertical difference with halo rows; image-edge rows are zero-padded
        up = pltpu.roll(x, shift=1, axis=0)                  # up[i] = x[i-1] (row 0 wraps)
        dn = pltpu.roll(x, shift=th - 1, axis=0)             # dn[i] = x[i+1] (last wraps)

        top = top_ref[hb - 1:hb, :].astype(jnp.float32)      # (1, W) row above the strip
        bot = bot_ref[0:1, :].astype(jnp.float32)            # (1, W) row below the strip
        top = top * (h > 0).astype(jnp.float32)              # zero-pad above the image
        bot = bot * (h < nh - 1).astype(jnp.float32)         # zero-pad below the image

        row = jax.lax.broadcasted_iota(jnp.int32, (th, w), 0)
        up = jnp.where(row == 0, top, up)
        dn = jnp.where(row == th - 1, bot, dn)
        g_v = dn - up

        g_h = _horizontal_diff(x, th, w)

        o_ref[...] = jnp.sqrt(g_v * g_v + g_h * g_h + 1e-6)

    return kernel


def _pick_row_block(H, W, itemsize=4, budget_bytes=2 << 20):
    """Largest strip height TH that (a) divides H, (b) is a multiple of 8, and
    (c) keeps one strip at ~budget_bytes; falls back to the full H (single strip)."""
    rows = max(8, budget_bytes // max(W * itemsize, 1))
    if H <= rows:
        return H
    best = None
    d = 8
    while d <= rows:
        if H % d == 0:
            best = d
        d += 8
    # TODO(synk): if H has no multiple-of-8 divisor <= budget, we fall back to a
    # full-frame strip; pathological shapes could exceed the VMEM limit.
    return best if best is not None else H


def get_gradient_nopadding(x, row_block=None):
    """x: (N, C, H, W) (NCHW, like PyTorch). Returns (N, 1, H, W) float32."""
    N, C, H, W = x.shape

    TH = _pick_row_block(H, W) if row_block is None else int(row_block)
    compiler_params = pltpu.CompilerParams(
        dimension_semantics=("parallel", "parallel"),
        vmem_limit_bytes=32 * 1024 * 1024,
    )

    if TH >= H:
        # ---- single-strip path: one input block / one output block per batch elem
        full_map = lambda n, _unused=None: (n, 0, 0, 0)
        out = pl.pallas_call(
            _make_full_kernel(H, W),
            out_shape=jax.ShapeDtypeStruct((N, 1, H, W), jnp.float32),
            grid_spec=pltpu.PrefetchScalarGridSpec(
                num_scalar_prefetch=0,
                grid=(N,),
                in_specs=[pl.BlockSpec((None, None, H, W), lambda n: (n, 0, 0, 0))],
                out_specs=pl.BlockSpec((None, None, H, W), lambda n: (n, 0, 0, 0)),
            ),
            compiler_params=pltpu.CompilerParams(
                dimension_semantics=("parallel",),
                vmem_limit_bytes=32 * 1024 * 1024,
            ),
        )(x)
        return out

    # ---- row-strip path with halo blocks
    assert TH % 8 == 0 and H % TH == 0, "row_block must divide H and be a multiple of 8"
    num_strips = H // TH
    HB = 8                      # halo block height (content masked at image edges)
    tpb = TH // 8               # 8-row blocks per strip
    nhb = H // 8                # total 8-row blocks along H

    main_map = lambda n, h: (n, 0, h, 0)
    top_map = lambda n, h: (n, 0, jnp.maximum(h * tpb - 1, 0), 0)
    bot_map = lambda n, h: (n, 0, jnp.minimum((h + 1) * tpb, nhb - 1), 0)

    out = pl.pallas_call(
        _make_strip_kernel(TH, W, HB),
        out_shape=jax.ShapeDtypeStruct((N, 1, H, W), jnp.float32),
        grid_spec=pltpu.PrefetchScalarGridSpec(
            num_scalar_prefetch=0,
            grid=(N, num_strips),
            in_specs=[
                pl.BlockSpec((None, None, TH, W), main_map),
                pl.BlockSpec((None, None, HB, W), top_map),
                pl.BlockSpec((None, None, HB, W), bot_map),
            ],
            out_specs=pl.BlockSpec((None, None, TH, W), main_map),
        ),
        compiler_params=compiler_params,
    )(x, x, x)
    return out


def _reference(x):
    """Plain-JAX reference: explicit cross-correlation with the 3x3 kernels."""
    x0 = x[:, 0].astype(jnp.float32)
    x0p = jnp.pad(x0, ((0, 0), (1, 1), (1, 1)))
    N, H, W = x0.shape
    v = jnp.zeros_like(x0)
    h = jnp.zeros_like(x0)
    for di in range(3):
        for dj in range(3):
            patch = x0p[:, di:di + H, dj:dj + W]
            v = v + KERNEL_V[di, dj] * patch
            h = h + KERNEL_H[di, dj] * patch
    return jnp.sqrt(v * v + h * h + 1e-6)[:, None]


if __name__ == "__main__":
    key = jax.random.PRNGKey(0)
    x = jax.random.normal(key, (2, 4, 16, 16), dtype=jnp.float32)

    ref = _reference(x)

    # Default path: auto-picked row block (single strip for this small image).
    out1 = jax.block_until_ready(get_gradient_nopadding(x))
    assert out1.shape == (2, 1, 16, 16), out1.shape
    assert jnp.allclose(out1, ref, atol=1e-5, rtol=1e-5), float(jnp.max(jnp.abs(out1 - ref)))

    # Row-strip-tiled path with halo rows (TH=8 -> 2 strips per image), validated too.
    out2 = jax.block_until_ready(get_gradient_nopadding(x, row_block=8))
    assert out2.shape == (2, 1, 16, 16), out2.shape
    assert jnp.allclose(out2, ref, atol=1e-5, rtol=1e-5), float(jnp.max(jnp.abs(out2 - ref)))

    print("KERNEL_OK")
</pallas_src>

<mosaic_0001>
module attributes {stable_mosaic.version = 11 : i64} {
  func.func @kernel(%arg0: i32, %arg1: memref<1x1x16x16xf32, #tpu.memory_space<vmem>>, %arg2: memref<1x1x16x16xf32, #tpu.memory_space<vmem>>) attributes {dimension_semantics = [#tpu.dimension_semantics<parallel>], iteration_bounds = array<i64: 2>, scalar_prefetch = 0 : i64, scratch_operands = 0 : i64, tpu.core_type = #tpu.core_type<tc>, window_params = [{transform_indices = @transform_0, window_bounds = array<i64: 1, 1, 16, 16>}, {transform_indices = @transform_1, window_bounds = array<i64: 1, 1, 16, 16>}]} {
    %c0 = arith.constant 0 : index
    %c0_0 = arith.constant 0 : index
    %c0_1 = arith.constant 0 : index
    %c0_2 = arith.constant 0 : index
    %0 = vector.load %arg1[%c0, %c0_0, %c0_1, %c0_2] : memref<1x1x16x16xf32, #tpu.memory_space<vmem>>, vector<1x1x16x16xf32>
    %1 = vector.shape_cast %0 : vector<1x1x16x16xf32> to vector<16x16xf32>
    %c1_i32 = arith.constant 1 : i32
    %2 = tpu.dynamic_rotate %1 by %c1_i32 dim 0 : vector<16x16xf32>, i32 -> vector<16x16xf32>
    %c15_i32 = arith.constant 15 : i32
    %3 = tpu.dynamic_rotate %1 by %c15_i32 dim 0 : vector<16x16xf32>, i32 -> vector<16x16xf32>
    %4 = tpu.iota {dimensions = array<i32: 0>} : vector<16x16xi32>
    %c0_i32 = arith.constant 0 : i32
    %5 = vector.broadcast %c0_i32 : i32 to vector<16x16xi32>
    %6 = arith.cmpi eq, %4, %5 : vector<16x16xi32>
    %cst = arith.constant 0.000000e+00 : f32
    %7 = vector.broadcast %cst : f32 to vector<16x16xf32>
    %8 = arith.select %6, %7, %2 : vector<16x16xi1>, vector<16x16xf32>
    %c15_i32_3 = arith.constant 15 : i32
    %9 = vector.broadcast %c15_i32_3 : i32 to vector<16x16xi32>
    %10 = arith.cmpi eq, %4, %9 : vector<16x16xi32>
    %cst_4 = arith.constant 0.000000e+00 : f32
    %11 = vector.broadcast %cst_4 : f32 to vector<16x16xf32>
    %12 = arith.select %10, %11, %3 : vector<16x16xi1>, vector<16x16xf32>
    %13 = arith.subf %12, %8 : vector<16x16xf32>
    %c1_i32_5 = arith.constant 1 : i32
    %14 = tpu.dynamic_rotate %1 by %c1_i32_5 dim 1 : vector<16x16xf32>, i32 -> vector<16x16xf32>
    %c15_i32_6 = arith.constant 15 : i32
    %15 = tpu.dynamic_rotate %1 by %c15_i32_6 dim 1 : vector<16x16xf32>, i32 -> vector<16x16xf32>
    %16 = tpu.iota {dimensions = array<i32: 1>} : vector<16x16xi32>
    %c0_i32_7 = arith.constant 0 : i32
    %17 = vector.broadcast %c0_i32_7 : i32 to vector<16x16xi32>
    %18 = arith.cmpi eq, %16, %17 : vector<16x16xi32>
    %cst_8 = arith.constant 0.000000e+00 : f32
    %19 = vector.broadcast %cst_8 : f32 to vector<16x16xf32>
    %20 = arith.select %18, %19, %14 : vector<16x16xi1>, vector<16x16xf32>
    %c15_i32_9 = arith.constant 15 : i32
    %21 = vector.broadcast %c15_i32_9 : i32 to vector<16x16xi32>
    %22 = arith.cmpi eq, %16, %21 : vector<16x16xi32>
    %cst_10 = arith.constant 0.000000e+00 : f32
    %23 = vector.broadcast %cst_10 : f32 to vector<16x16xf32>
    %24 = arith.select %22, %23, %15 : vector<16x16xi1>, vector<16x16xf32>
    %25 = arith.subf %24, %20 : vector<16x16xf32>
    %26 = arith.mulf %13, %13 : vector<16x16xf32>
    %27 = arith.mulf %25, %25 : vector<16x16xf32>
    %28 = arith.addf %26, %27 : vector<16x16xf32>
    %cst_11 = arith.constant 9.99999997E-7 : f32
    %29 = vector.broadcast %cst_11 : f32 to vector<16x16xf32>
    %30 = arith.addf %28, %29 : vector<16x16xf32>
    %31 = math.sqrt %30 : vector<16x16xf32>
    %c0_12 = arith.constant 0 : index
    %c0_13 = arith.constant 0 : index
    %c0_14 = arith.constant 0 : index
    %c0_15 = arith.constant 0 : index
    %32 = vector.load %arg2[%c0_12, %c0_13, %c0_14, %c0_15] : memref<1x1x16x16xf32, #tpu.memory_space<vmem>>, vector<1x1x16x16xf32>
    %33 = vector.shape_cast %32 : vector<1x1x16x16xf32> to vector<16x16xf32>
    %34 = vector.shape_cast %31 : vector<16x16xf32> to vector<1x1x16x16xf32>
    tpu.vector_store %arg2[%c0_12, %c0_13, %c0_14, %c0_15], %34 {strides = array<i32>} : memref<1x1x16x16xf32, #tpu.memory_space<vmem>>, vector<1x1x16x16xf32>,
    return
  }
  func.func @transform_0(%arg0: i32) -> (i32, i32, i32, i32) {
    %c0_i32 = arith.constant 0 : i32
    %c0_i32_0 = arith.constant 0 : i32
    %c0_i32_1 = arith.constant 0 : i32
    %c0_i32_2 = arith.constant 0 : i32
    return %arg0, %c0_i32, %c0_i32_0, %c0_i32_1 : i32, i32, i32, i32
  }
  func.func @transform_1(%arg0: i32) -> (i32, i32, i32, i32) {
    %c0_i32 = arith.constant 0 : i32
    %c0_i32_0 = arith.constant 0 : i32
    %c0_i32_1 = arith.constant 0 : i32
    %c0_i32_2 = arith.constant 0 : i32
    return %arg0, %c0_i32, %c0_i32_0, %c0_i32_1 : i32, i32, i32, i32
  }
}

</mosaic_0001>

<llo_original>
// kernel: tpu_custom_call.1
$region0: #{tpu_custom_call.1}
  #allocation0 [shape = 'u32[]', space=smem, size = 0x4, offset = 0x4, fixed_abs, tag = 'smem constant byte address 0x4 - core index']
  #allocation1 [shape = 'u32[144,128]{1,0:T(1,128)}', space=vmem, size = 0x12000, scoped, tag = 'internal scratch']
  %s0 = inlined_call_operand.hbm [shape: f32[2,4,16,16], index: 0, kind: input, shape index: {}]
  %s1 = inlined_call_operand.hbm [shape: f32[2,1,16,16], index: 1, kind: output, shape index: {}]
  %s2 = sld [smem:[#allocation0]]
  $region41: #{tpu_custom_call.1} parent=0
    _
  %s4 = ssub.s32 1, %s2
  %s5 = scalar_select 0, %s4, %s2
  $region1: #{tpu_custom_call.1} parent=0
    #allocation2 [shape = 'u8[16384]{0}', space=vmem, size = 0x4000, scoped, tag = 'input window, operand 0']
    #allocation3 [shape = 's32[2]{0}', space=sflag, size = 0x8, scoped, tag = 'scoped memory for tpu_custom_call.1']
    #allocation4 [shape = 's32[2]{0}', space=sflag, size = 0x8, scoped, tag = 'scoped memory for tpu_custom_call.1']
    #allocation5 [shape = 'u8[16384]{0}', space=vmem, size = 0x4000, scoped, tag = 'output window, operand 0']
    %6 = vsyncpa [#allocation3], 0
    %s7 = scalar_lea.sflag [#allocation3], 1
    %8 = vsyncpa %s7, 0
    %9 = vsyncpa [#allocation4], 0
    %s10 = scalar_lea.sflag [#allocation4], 1
    %11 = vsyncpa %s10, 0
    loop: start=0, step=1, limit=4
    $region2: #{tpu_custom_call.1} parent=1 // loop_pre_header
      _
    $region3: #{tpu_custom_call.1} parent=1 // loop_header
      %s13 = sphi 0, %s17
      %p14 = scmp.ge.s32.totalorder %s13, 4
      %s23 = sphi 0, %s25
      %s26 = sphi 0, %s23
      %s27 = sphi 0, %s26
      %s43 = sphi 0, %s27
      %s49 = sphi 0, %s51
      %s52 = sphi 0, %s49
      %s53 = sphi 0, %s52
      %s69 = sphi 0, %s53
    $region4: #{tpu_custom_call.1} parent=1 // loop_header_branch
      %16 = sbr.rel (%p14) target = $region8
    $region5: #{tpu_custom_call.1} parent=1 // loop_body
      %s18 = ssub.s32 %s13, 1
      %s19 = ssub.s32 %s13, 2
      %s20 = sadd.s32 %s13, 1
      %s21 = ssub.s32 %s13, %s20
      %p22 = scmp.eq.s32.totalorder %s21, 0
      %s24 = sadd.s32 %s23, 1
      %s25 = scalar_select %p22, %s23, %s24
      %p28 = pneg %p22
      %p29 = scmp.eq.s32.totalorder %s13, 1
      %p30 = por %p28, %p29
      %p31 = scmp.ne.s32.totalorder %s23, %s26
      %p32 = scmp.eq.s32.totalorder %s13, 0
      %p33 = por %p31, %p32
      %p34 = scmp.ne.s32.totalorder %s23, %s26
      %p35 = scmp.eq.s32.totalorder %s18, 1
      %p36 = por %p34, %p35
      %p37 = scmp.ne.s32.totalorder %s26, %s27
      %p38 = scmp.eq.s32.totalorder %s18, 0
      %p39 = por %p37, %p38
      %p40 = scmp.ne.s32.totalorder %s26, %s27
      %p41 = scmp.eq.s32.totalorder %s19, 1
      %p42 = por %p40, %p41
      %p44 = scmp.ne.s32.totalorder %s27, %s43
      %p45 = scmp.eq.s32.totalorder %s19, 0
      %p46 = por %p44, %p45
      %s47 = ssub.s32 %s13, %s20
      %p48 = scmp.eq.s32.totalorder %s47, 0
      %s50 = sadd.s32 %s49, 1
      %s51 = scalar_select %p48, %s49, %s50
      %p54 = pneg %p48
      %p55 = scmp.eq.s32.totalorder %s13, 1
      %p56 = por %p54, %p55
      %p57 = scmp.ne.s32.totalorder %s49, %s52
      %p58 = scmp.eq.s32.totalorder %s13, 0
      %p59 = por %p57, %p58
      %p60 = scmp.ne.s32.totalorder %s49, %s52
      %p61 = scmp.eq.s32.totalorder %s18, 1
      %p62 = por %p60, %p61
      %p63 = scmp.ne.s32.totalorder %s52, %s53
      %p64 = scmp.eq.s32.totalorder %s18, 0
      %p65 = por %p63, %p64
      %p66 = scmp.ne.s32.totalorder %s52, %s53
      %p67 = scmp.eq.s32.totalorder %s19, 1
      %p68 = por %p66, %p67
      %p70 = scmp.ne.s32.totalorder %s53, %s69
      %p71 = scmp.eq.s32.totalorder %s19, 0
      %p72 = por %p70, %p71
      %p73 = scmp.le.s32.totalorder 1, %s13
      %p74 = scmp.lt.s32.totalorder %s13, 3
      %p75 = pnand %p73, %p74
      %p76 = pneg %p75
      // Predicated region
      $region9: #{tpu_custom_call.1} parent=5 // pred_check
        _
      $region10: #{tpu_custom_call.1} parent=5 // pred_check_branch
        %78 = sbr.rel (%p75) target = $region12
      $region11: #{tpu_custom_call.1} parent=5 // pred_region
        %s79 = ssub.s32 %s13, 1
      $region12: #{tpu_custom_call.1} parent=5 // pred_fallthru
        _
      %p80 = scmp.lt.s32.totalorder %s13, 2
      // Predicated region
      $region13: #{tpu_custom_call.1} parent=5 // pred_check
        %p81 = pneg %p80
      $region14: #{tpu_custom_call.1} parent=5 // pred_check_branch
        %83 = sbr.rel (%p81) target = $region16
      $region15: #{tpu_custom_call.1} parent=5 // pred_region
        // Predicated region
        $region17: #{tpu_custom_call.1} parent=15 // pred_check
          %p84 = pneg %p33
        $region18: #{tpu_custom_call.1} parent=15 // pred_check_branch
          %86 = sbr.rel (%p84) target = $region20
        $region19: #{tpu_custom_call.1} parent=15 // pred_region
          %s87 = sand.u32 %s23, 1
          %s88 = scalar_lea.sflag [#allocation3], %s87
          %s89 = sand.u32 %s23, 1
          %s90 = smul.addr %s89, 16
          %s91 = scalar_lea.vmem [#allocation2], %s90
          %s93 = ssub.s32 256, 256
          %94 = vsyncadd %s88, %s93
          %s95 = smul.addr %s13, 8
          %s96 = smul.addr %s95, 128
          %s97 = scalar_lea.hbm %s0, %s96
          %s98 = sshll.u32 %s91, 4
          %s99 = int_to_ptr.vmem [resolvable:$true] %s98
          %104 = dma.hbm_to_vmem [thread:$0]  %s97, 256, %s99, %s88, 128, 128, 8
        $region20: #{tpu_custom_call.1} parent=15 // pred_fallthru
          _
      $region16: #{tpu_custom_call.1} parent=5 // pred_fallthru
        _
      %p105 = scmp.le.s32.totalorder 1, %s13
      %p106 = scmp.lt.s32.totalorder %s13, 3
      %p107 = pnand %p105, %p106
      %p108 = pneg %p107
      // Predicated region
      $region21: #{tpu_custom_call.1} parent=5 // pred_check
        _
      $region22: #{tpu_custom_call.1} parent=5 // pred_check_branch
        %110 = sbr.rel (%p107) target = $region24
      $region23: #{tpu_custom_call.1} parent=5 // pred_region
        %s111 = ssub.s32 %s13, 1
        %s112 = sand.u32 %s26, 1
        %s113 = scalar_lea.sflag [#allocation3], %s112
        %s114 = sand.u32 %s26, 1
        %s115 = smul.addr %s114, 16
        %s116 = scalar_lea.vmem [#allocation2], %s115
        // Predicated region
        $region25: #{tpu_custom_call.1} parent=23 // pred_check
          %p117 = pneg %p39
        $region26: #{tpu_custom_call.1} parent=23 // pred_check_branch
          %119 = sbr.rel (%p117) target = $region28
        $region27: #{tpu_custom_call.1} parent=23 // pred_region
          %120 = dma.done %s113, 256
        $region28: #{tpu_custom_call.1} parent=23 // pred_fallthru
          _
        %s121 = sand.u32 %s26, 1
        %s122 = scalar_lea.sflag [#allocation3], %s121
        %s123 = sand.u32 %s26, 1
        %s124 = smul.addr %s123, 16
        %s125 = scalar_lea.vmem [#allocation2], %s124
        %p126 = pneg %p39
        %p127 = pneg %p36
        %p128 = pneg %p65
        %p129 = pneg %p62
        %s130 = sand.u32 %s52, 1
        %s131 = scalar_lea.sflag [#allocation4], %s130
        %s132 = sand.u32 %s52, 1
        %s133 = smul.addr %s132, 16
        %s134 = scalar_lea.vmem [#allocation5], %s133
        %v135 = vld [vmem:[%s116] sm:$0xff]
        %v136 = vld [vmem:[%s116 + $0x8] sm:$0xff]
        %v137 = vrot.slane %v135, 7
        %v138 = vrot.slane %v136, 7
        %v139 = vlaneseq
        %v140 = vshrl.u32 %v139, 7
        %vm141 = vcmp.lt.s32.totalorder %v140, 1
        %v142 = vsel %vm141, %v137, %v138
        %v143 = vsel %vm141, %v138, %v137
        %v144 = vrot.slane %v135, 1
        %v145 = vrot.slane %v136, 1
        %vm146 = vcmp.lt.s32.totalorder %v140, 7
        %v147 = vsel %vm146, %v144, %v145
        %v148 = vsel %vm146, %v145, %v144
        %v149 = vadd.s32 %v140, 8
        %vm150 = vcmp.eq.s32.totalorder %v140, 0
        %vm151 = vcmp.eq.s32.totalorder %v149, 0
        %v152 = vsel %vm150, 0.0, %v143
        %v153 = vsel %vm151, 0.0, %v142
        %vm154 = vcmp.eq.s32.totalorder %v140, 15
        %vm155 = vcmp.eq.s32.totalorder %v149, 15
        %v156 = vsel %vm154, 0.0, %v147
        %v157 = vsel %vm155, 0.0, %v148
        %v158 = vsub.f32 %v156, %v152
        %v159 = vsub.f32 %v157, %v153
        %vm160 = vcmask 1047680
        %161 = vrot.lane.b32.xlu0 %v135, 16
        %v162 = vpop.permute.xlu0 %161
        %v163 = vsel %vm160, %v162, %v135
        %164 = vrot.lane.b32.xlu0 %v136, 16
        %v165 = vpop.permute.xlu0 %164
        %v166 = vsel %vm160, %v165, %v136
        %167 = vrot.lane.b32.xlu0 %v163, 16
        %v168 = vpop.permute.xlu0 %167
        %169 = vrot.lane.b32.xlu0 %v166, 16
        %v170 = vpop.permute.xlu0 %169
        %v171 = vsel %vm160, %v168, %v135
        %v172 = vsel %vm160, %v170, %v136
        %v173 = vlaneseq
        %v174 = vand.u32 %v173, 127
        %vm175 = vcmp.eq.s32.totalorder %v174, 0
        %178 = vrot.lane.b32.xlu0 %v171, 113
        %v179 = vpop.permute.xlu0 %178
        %180 = vrot.lane.b32.xlu0 %v172, 113
        %v181 = vpop.permute.xlu0 %180
        %v184 = vsel %vm175, 0.0, %v179
        %v185 = vsel %vm175, 0.0, %v181
        %vm186 = vcmp.eq.s32.totalorder %v174, 15
        %187 = vrot.lane.b32.xlu0 %v171, 127
        %v188 = vpop.permute.xlu0 %187
        %189 = vrot.lane.b32.xlu0 %v172, 127
        %v190 = vpop.permute.xlu0 %189
        %v193 = vsel %vm186, 0.0, %v188
        %v194 = vsel %vm186, 0.0, %v190
        %v195 = vsub.f32 %v193, %v184
        %v196 = vsub.f32 %v194, %v185
        %v197 = vmul.f32 %v158, %v158
        %v198 = vmul.f32 %v159, %v159
        %v199 = vmul.f32 %v195, %v195
        %v200 = vmul.f32 %v196, %v196
        %v201 = vadd.f32 %v197, %v199
        %v202 = vadd.f32 %v198, %v200
        %v203 = vadd.f32 %v201, 1e-06
        %v204 = vadd.f32 %v202, 1e-06
        %v205 = vrsqrt.pop %v203
        %v206 = vmul.f32 %v203, %v205
        %vm207 = vcmp.eq.f32.partialorder %v203, inf
        %v208 = vsel %vm207, %v203, %v206
        %vm209 = vcmp.eq.f32.partialorder %v203, 0.0
        %v210 = vand.u32 %v203, 2147483648
        %v211 = vsel %vm209, %v210, %v208
        %v212 = vrsqrt.pop %v204
        %v213 = vmul.f32 %v204, %v212
        %vm214 = vcmp.eq.f32.partialorder %v204, inf
        %v215 = vsel %vm214, %v204, %v213
        %vm216 = vcmp.eq.f32.partialorder %v204, 0.0
        %v217 = vand.u32 %v204, 2147483648
        %v218 = vsel %vm216, %v217, %v215
        %vm219 = vcmask 130048
        %220 = vst.msk [vmem:[%s134] sm:$0xff] %vm219, %v211
        %221 = vst.msk [vmem:[%s134 + $0x8] sm:$0xff] %vm219, %v218
        %s222 = sand.u32 %s52, 1
        %s223 = scalar_lea.sflag [#allocation4], %s222
        %s224 = sand.u32 %s52, 1
        %s225 = smul.addr %s224, 16
        %s226 = scalar_lea.vmem [#allocation5], %s225
        // Predicated region
        $region29: #{tpu_custom_call.1} parent=23 // pred_check
          %p227 = pneg %p62
        $region30: #{tpu_custom_call.1} parent=23 // pred_check_branch
          %229 = sbr.rel (%p227) target = $region32
        $region31: #{tpu_custom_call.1} parent=23 // pred_region
          %s231 = ssub.s32 256, 256
          %232 = vsyncadd %s223, %s231
          %s233 = smul.addr %s18, 2
          %s234 = smul.addr %s233, 128
          %s235 = scalar_lea.hbm %s1, %s234
          %s236 = sshll.u32 %s226, 4
          %s237 = int_to_ptr.vmem [resolvable:$true] %s236
          %242 = dma.vmem_to_hbm [thread:$0]  %s237, 256, %s235, %s223, 128, 128, 8
        $region32: #{tpu_custom_call.1} parent=23 // pred_fallthru
          _
      $region24: #{tpu_custom_call.1} parent=5 // pred_fallthru
        _
      %p243 = scmp.le.s32.totalorder 2, %s13
      // Predicated region
      $region33: #{tpu_custom_call.1} parent=5 // pred_check
        %p244 = pneg %p243
      $region34: #{tpu_custom_call.1} parent=5 // pred_check_branch
        %246 = sbr.rel (%p244) target = $region36
      $region35: #{tpu_custom_call.1} parent=5 // pred_region
        %s247 = ssub.s32 %s13, 2
        // Predicated region
        $region37: #{tpu_custom_call.1} parent=35 // pred_check
          %p248 = pneg %p68
        $region38: #{tpu_custom_call.1} parent=35 // pred_check_branch
          %250 = sbr.rel (%p248) target = $region40
        $region39: #{tpu_custom_call.1} parent=35 // pred_region
          %s251 = sand.u32 %s53, 1
          %s252 = scalar_lea.sflag [#allocation4], %s251
          %s253 = sand.u32 %s53, 1
          %s254 = smul.addr %s253, 16
          %s255 = scalar_lea.vmem [#allocation5], %s254
          %256 = dma.done %s252, 256
        $region40: #{tpu_custom_call.1} parent=35 // pred_fallthru
          _
      $region36: #{tpu_custom_call.1} parent=5 // pred_fallthru
        _
    $region6: #{tpu_custom_call.1} parent=1 // loop_footer
      %s17 = sadd.s32 1, %s13
    $region7: #{tpu_custom_call.1} parent=1 // loop_footer_branch
      %12 = sbr.rel target = $region3
    $region8: #{tpu_custom_call.1} parent=1 // loop_exit
      _
    %257 = vsyncpa [#allocation3], 1
    %s258 = scalar_lea.sflag [#allocation3], 1
    %259 = vsyncpa %s258, 1
    %260 = vsyncpa [#allocation4], 1
    %s261 = scalar_lea.sflag [#allocation4], 1
    %262 = vsyncpa %s261, 1

</llo_original>
